<compile_context>
chip_gen: v7x
topology: tpu7x:2x2x1
jax: 0.10.0
libtpu: 0.0.40
codegen_flags: <defaults>
</compile_context>

<pallas_src>
import jax
import jax.numpy as jnp
from jax.experimental import pallas as pl
from jax.experimental.pallas import tpu as pltpu

BN_EPS = 1e-5


def _round_up(x, m):
    return (x + m - 1) // m * m


def _cdiv(a, b):
    return -(-a // b)


def _pick_tile(b16, max_tile=256):
    """Balanced batch tile (multiple of 16, <= max_tile rows).

    Keeps padding waste below one tile and produces >= 2 grid steps whenever
    the (16-rounded) batch exceeds max_tile, so the "parallel" grid axis can
    actually be sharded across v7x's two TensorCores.
    """
    if b16 <= max_tile:
        return b16
    n_tiles = _cdiv(b16, max_tile)
    return _round_up(_cdiv(b16, n_tiles), 16)


def _vmem_limit_bytes(tb, e, npad):
    """Explicit scoped-VMEM budget from the actual footprint (2x headroom)."""
    bf, f4 = 2, 4
    act = tb * 2 * e * bf + tb * npad * f4                       # per buffer
    wts = (2 * e * e + e * e + e * npad + 2 * e * npad) * bf + e * f4
    need = 2 * (act + wts)                                       # double-buffered
    return int(min(64 << 20, max(2 * need, 8 << 20)))


def fuse_head_kernel(fea_ref, w1_ref, b1_ref, w2_ref, wch_ref, wcf_ref, out_ref):
    """One batch tile; all weights VMEM-resident across grid steps.

    fea_ref : [TB, 2E]   bf16  concat(vis, box) features
    w1_ref  : [2E, E]    bf16  BN-folded fuse_layer[0].weight.T
    b1_ref  : [1, E]     f32   BN-folded bias (beta - mean*scale)
    w2_ref  : [E, E]     bf16  fuse_layer[3].weight.T
    wch_ref : [E, NPAD]  bf16  fuse classifier      (cols 0:C)
    wcf_ref : [2E, NPAD] bf16  vis/box stub heads   (cols C:2C / 2C:3C)
    out_ref : [TB, NPAD] f32   fused, lane-dense classifier slab
    """
    fea = fea_ref[...]

    # Linear(2E -> E, bias=False) with eval-mode BatchNorm folded in, + ReLU.
    h = jnp.dot(fea, w1_ref[...], preferred_element_type=jnp.float32)
    h = jnp.maximum(h + b1_ref[...], 0.0)

    # Linear(E -> E, bias=False) + ReLU.  Dropout(p=0.5) is identity in eval.
    h = jnp.dot(h.astype(w2_ref.dtype), w2_ref[...],
                preferred_element_type=jnp.float32)
    h = jnp.maximum(h, 0.0)

    # Fused lane-dense classifier slab: cols [0:C) fuse, [C:2C) vis, [2C:3C) box.
    out = jnp.dot(h.astype(wch_ref.dtype), wch_ref[...],
                  preferred_element_type=jnp.float32)
    out = out + jnp.dot(fea, wcf_ref[...], preferred_element_type=jnp.float32)
    out_ref[...] = out


def fuse_head_pallas(fea, w1, b1, w2, wch, wcf, *, tb):
    bp, e2 = fea.shape
    npad = wch.shape[1]

    resident = lambda a: pl.BlockSpec(a.shape, lambda i: (0, 0))

    return pl.pallas_call(
        fuse_head_kernel,
        out_shape=jax.ShapeDtypeStruct((bp, npad), jnp.float32),
        grid=(bp // tb,),
        in_specs=[
            pl.BlockSpec((tb, e2), lambda i: (i, 0)),
            resident(w1), resident(b1), resident(w2),
            resident(wch), resident(wcf),
        ],
        out_specs=pl.BlockSpec((tb, npad), lambda i: (i, 0)),
        compiler_params=pltpu.CompilerParams(
            dimension_semantics=("parallel",),
            vmem_limit_bytes=_vmem_limit_bytes(tb, e2 // 2, npad)),
    )(fea, w1, b1, w2, wch, wcf)


class ReasonRegionHeadPallas:
    """Eval-mode forward of ReasonRegionHead; the whole head runs in one Pallas kernel."""

    def __init__(self, embed_dim, num_classes, key):
        E, C = embed_dim, num_classes
        self.embed_dim, self.num_classes = E, C
        ks = jax.random.split(key, 6)
        # PyTorch nn.Linear convention: weight is [out, in].
        self.w1 = jax.random.normal(ks[0], (E, 2 * E), jnp.float32) * 0.02
        self.w2 = jax.random.normal(ks[1], (E, E), jnp.float32) * 0.02
        self.wc = jax.random.normal(ks[2], (C, E), jnp.float32) * 0.02
        # BatchNorm1d parameters / running stats (deterministic, non-trivial).
        self.bn_gamma = 1.0 + 0.1 * jax.random.normal(ks[3], (E,), jnp.float32)
        self.bn_beta = 0.1 * jax.random.normal(ks[4], (E,), jnp.float32)
        self.bn_mean = 0.05 * jax.random.normal(ks[5], (E,), jnp.float32)
        self.bn_var = jnp.ones((E,), jnp.float32)
        # Stub classifier heads for the undefined vis/box sub-nets.
        self.w_vis_cls = jax.random.normal(jax.random.PRNGKey(101), (C, E), jnp.float32) * 0.02
        self.w_box_cls = jax.random.normal(jax.random.PRNGKey(102), (C, E), jnp.float32) * 0.02
        self._prepare_kernel_params()
        self._forward = jax.jit(self._forward_impl)

    def _prepare_kernel_params(self):
        E, C = self.embed_dim, self.num_classes
        # Fold eval-mode BatchNorm into the first linear (in f32), then cast
        # the stacked [2E, E] weight to bf16 for the MXU; bias stays f32.
        scale = self.bn_gamma * jax.lax.rsqrt(self.bn_var + BN_EPS)          # [E]
        self.k_w1 = (self.w1.T * scale[None, :]).astype(jnp.bfloat16)       # [2E, E]
        self.k_b1 = (self.bn_beta - self.bn_mean * scale).reshape(1, E)     # [1, E] f32
        self.k_w2 = self.w2.T.astype(jnp.bfloat16)                          # [E, E]
        # Lane-dense fused classifier weights: pad 3*C columns up to >=128.
        self.npad = max(128, _round_up(3 * C, 128))
        wch = jnp.zeros((E, self.npad), jnp.float32).at[:, 0:C].set(self.wc.T)
        wcf = jnp.zeros((2 * E, self.npad), jnp.float32)
        wcf = wcf.at[:E, C:2 * C].set(self.w_vis_cls.T)
        wcf = wcf.at[E:, 2 * C:3 * C].set(self.w_box_cls.T)
        self.k_wch = wch.astype(jnp.bfloat16)
        self.k_wcf = wcf.astype(jnp.bfloat16)

    def _forward_impl(self, vis, box):
        B, _ = vis.shape
        C = self.num_classes
        b16 = _round_up(max(B, 1), 16)
        tb = _pick_tile(b16)
        bp = _round_up(b16, tb)
        # One fused (jit) preprocessing op: concat + bf16 cast (+ batch pad).
        # torch's .clone().detach() only affects gradients, not forward values.
        fea = jnp.concatenate([vis, box], axis=-1).astype(jnp.bfloat16)
        if bp != B:
            fea = jnp.pad(fea, ((0, bp - B), (0, 0)))
        out = fuse_head_pallas(fea, self.k_w1, self.k_b1, self.k_w2,
                               self.k_wch, self.k_wcf, tb=tb)
        out = out[:B]
        # Output slab kept in f32 (logits); could be emitted bf16 if downstream tolerates.
        return out[:, 0:C], out[:, C:2 * C], out[:, 2 * C:3 * C]

    def __call__(self, vis_reason_outs, box_reason_outs):
        return self._forward(vis_reason_outs, box_reason_outs)


def _reference(vis, box, head):
    """Plain-JAX f32 reference (un-folded BN) matching the PyTorch eval forward."""
    fuse_fea = jnp.concatenate([vis, box], axis=-1)
    h = fuse_fea @ head.w1.T
    h = (h - head.bn_mean) / jnp.sqrt(head.bn_var + BN_EPS) * head.bn_gamma + head.bn_beta
    h = jnp.maximum(h, 0.0)
    h = jnp.maximum(h @ head.w2.T, 0.0)
    fuse_cls = h @ head.wc.T
    vis_cls = vis @ head.w_vis_cls.T
    box_cls = box @ head.w_box_cls.T
    return fuse_cls, vis_cls, box_cls


if __name__ == "__main__":
    B = 8            # batch
    EMBED_DIM = 32   # cfg.VIT.EMBED_DIM
    NUM_CLASSES = 8  # cfg.MODEL.NUM_CLASSES

    key = jax.random.PRNGKey(0)
    k_vis, k_box, k_params = jax.random.split(key, 3)
    vis_reason_outs = jax.random.normal(k_vis, (B, EMBED_DIM), jnp.float32)
    box_reason_outs = jax.random.normal(k_box, (B, EMBED_DIM), jnp.float32)

    head = ReasonRegionHeadPallas(EMBED_DIM, NUM_CLASSES, k_params)

    fuse_cls, vis_cls, box_cls = head(vis_reason_outs, box_reason_outs)
    jax.block_until_ready((fuse_cls, vis_cls, box_cls))

    ref_fuse, ref_vis, ref_box = _reference(vis_reason_outs, box_reason_outs, head)
    assert fuse_cls.shape == (B, NUM_CLASSES)
    assert vis_cls.shape == (B, NUM_CLASSES)
    assert box_cls.shape == (B, NUM_CLASSES)
    # bf16 weights/activations (f32 accumulation) -> loosened tolerances vs f32 ref.
    assert jnp.allclose(fuse_cls, ref_fuse, atol=5e-3, rtol=5e-2)
    assert jnp.allclose(vis_cls, ref_vis, atol=5e-3, rtol=5e-2)
    assert jnp.allclose(box_cls, ref_box, atol=5e-3, rtol=5e-2)

    print("KERNEL_OK")
</pallas_src>

<mosaic_0001>
module attributes {stable_mosaic.version = 11 : i64} {
  func.func @fuse_head_kernel(%arg0: i32, %arg1: memref<16x64xbf16, #tpu.memory_space<vmem>>, %arg2: memref<64x32xbf16, #tpu.memory_space<vmem>>, %arg3: memref<1x32xf32, #tpu.memory_space<vmem>>, %arg4: memref<32x32xbf16, #tpu.memory_space<vmem>>, %arg5: memref<32x128xbf16, #tpu.memory_space<vmem>>, %arg6: memref<64x128xbf16, #tpu.memory_space<vmem>>, %arg7: memref<16x128xf32, #tpu.memory_space<vmem>>) attributes {dimension_semantics = [#tpu.dimension_semantics<parallel>], iteration_bounds = array<i64: 1>, scalar_prefetch = 0 : i64, scratch_operands = 0 : i64, tpu.core_type = #tpu.core_type<tc>, window_params = [{transform_indices = @transform_0, window_bounds = array<i64: 16, 64>}, {pipeline_mode = #tpu.pipeline_mode<synchronous>, transform_indices = @transform_1, window_bounds = array<i64: 64, 32>}, {pipeline_mode = #tpu.pipeline_mode<synchronous>, transform_indices = @transform_2, window_bounds = array<i64: 1, 32>}, {pipeline_mode = #tpu.pipeline_mode<synchronous>, transform_indices = @transform_3, window_bounds = array<i64: 32, 32>}, {pipeline_mode = #tpu.pipeline_mode<synchronous>, transform_indices = @transform_4, window_bounds = array<i64: 32, 128>}, {pipeline_mode = #tpu.pipeline_mode<synchronous>, transform_indices = @transform_5, window_bounds = array<i64: 64, 128>}, {transform_indices = @transform_6, window_bounds = array<i64: 16, 128>}]} {
    %c0 = arith.constant 0 : index
    %c0_0 = arith.constant 0 : index
    %0 = vector.load %arg1[%c0, %c0_0] : memref<16x64xbf16, #tpu.memory_space<vmem>>, vector<16x64xbf16>
    %c0_1 = arith.constant 0 : index
    %c0_2 = arith.constant 0 : index
    %1 = vector.load %arg2[%c0_1, %c0_2] : memref<64x32xbf16, #tpu.memory_space<vmem>>, vector<64x32xbf16>
    %cst = arith.constant dense<0.000000e+00> : vector<16x32xf32>
    %2 = tpu.matmul %0, %1, %cst {dimension_numbers = #tpu.dot_dimension_numbers<[1], [0], [0], [1], [0, 0, 1, 1], [], []>} : vector<16x64xbf16>, vector<64x32xbf16>, vector<16x32xf32> -> vector<16x32xf32>
    %c0_3 = arith.constant 0 : index
    %c0_4 = arith.constant 0 : index
    %3 = vector.load %arg3[%c0_3, %c0_4] : memref<1x32xf32, #tpu.memory_space<vmem>>, vector<1x32xf32>
    %4 = vector.broadcast %3 : vector<1x32xf32> to vector<16x32xf32>
    %5 = arith.addf %2, %4 : vector<16x32xf32>
    %cst_5 = arith.constant 0.000000e+00 : f32
    %6 = vector.broadcast %cst_5 : f32 to vector<16x32xf32>
    %7 = arith.maximumf %5, %6 : vector<16x32xf32>
    %8 = arith.truncf %7 : vector<16x32xf32> to vector<16x32xbf16>
    %c0_6 = arith.constant 0 : index
    %c0_7 = arith.constant 0 : index
    %9 = vector.load %arg4[%c0_6, %c0_7] : memref<32x32xbf16, #tpu.memory_space<vmem>>, vector<32x32xbf16>
    %cst_8 = arith.constant dense<0.000000e+00> : vector<16x32xf32>
    %10 = tpu.matmul %8, %9, %cst_8 {dimension_numbers = #tpu.dot_dimension_numbers<[1], [0], [0], [1], [0, 0, 1, 1], [], []>} : vector<16x32xbf16>, vector<32x32xbf16>, vector<16x32xf32> -> vector<16x32xf32>
    %cst_9 = arith.constant 0.000000e+00 : f32
    %11 = vector.broadcast %cst_9 : f32 to vector<16x32xf32>
    %12 = arith.maximumf %10, %11 : vector<16x32xf32>
    %13 = arith.truncf %12 : vector<16x32xf32> to vector<16x32xbf16>
    %c0_10 = arith.constant 0 : index
    %c0_11 = arith.constant 0 : index
    %14 = vector.load %arg5[%c0_10, %c0_11] : memref<32x128xbf16, #tpu.memory_space<vmem>>, vector<32x128xbf16>
    %cst_12 = arith.constant dense<0.000000e+00> : vector<16x128xf32>
    %15 = tpu.matmul %13, %14, %cst_12 {dimension_numbers = #tpu.dot_dimension_numbers<[1], [0], [0], [1], [0, 0, 1, 1], [], []>} : vector<16x32xbf16>, vector<32x128xbf16>, vector<16x128xf32> -> vector<16x128xf32>
    %c0_13 = arith.constant 0 : index
    %c0_14 = arith.constant 0 : index
    %16 = vector.load %arg6[%c0_13, %c0_14] : memref<64x128xbf16, #tpu.memory_space<vmem>>, vector<64x128xbf16>
    %cst_15 = arith.constant dense<0.000000e+00> : vector<16x128xf32>
    %17 = tpu.matmul %0, %16, %cst_15 {dimension_numbers = #tpu.dot_dimension_numbers<[1], [0], [0], [1], [0, 0, 1, 1], [], []>} : vector<16x64xbf16>, vector<64x128xbf16>, vector<16x128xf32> -> vector<16x128xf32>
    %18 = arith.addf %15, %17 : vector<16x128xf32>
    %c0_16 = arith.constant 0 : index
    %c0_17 = arith.constant 0 : index
    %19 = vector.load %arg7[%c0_16, %c0_17] : memref<16x128xf32, #tpu.memory_space<vmem>>, vector<16x128xf32>
    tpu.vector_store %arg7[%c0_16, %c0_17], %18 {strides = array<i32>} : memref<16x128xf32, #tpu.memory_space<vmem>>, vector<16x128xf32>,
    return
  }
  func.func @transform_0(%arg0: i32) -> (i32, i32) {
    %c0_i32 = arith.constant 0 : i32
    %c0_i32_0 = arith.constant 0 : i32
    return %arg0, %c0_i32 : i32, i32
  }
  func.func @transform_1(%arg0: i32) -> (i32, i32) {
    %c0_i32 = arith.constant 0 : i32
    %c0_i32_0 = arith.constant 0 : i32
    %c0_i32_1 = arith.constant 0 : i32
    return %c0_i32, %c0_i32_0 : i32, i32
  }
  func.func @transform_2(%arg0: i32) -> (i32, i32) {
    %c0_i32 = arith.constant 0 : i32
    %c0_i32_0 = arith.constant 0 : i32
    %c0_i32_1 = arith.constant 0 : i32
    return %c0_i32, %c0_i32_0 : i32, i32
  }
  func.func @transform_3(%arg0: i32) -> (i32, i32) {
    %c0_i32 = arith.constant 0 : i32
    %c0_i32_0 = arith.constant 0 : i32
    %c0_i32_1 = arith.constant 0 : i32
    return %c0_i32, %c0_i32_0 : i32, i32
  }
  func.func @transform_4(%arg0: i32) -> (i32, i32) {
    %c0_i32 = arith.constant 0 : i32
    %c0_i32_0 = arith.constant 0 : i32
    %c0_i32_1 = arith.constant 0 : i32
    return %c0_i32, %c0_i32_0 : i32, i32
  }
  func.func @transform_5(%arg0: i32) -> (i32, i32) {
    %c0_i32 = arith.constant 0 : i32
    %c0_i32_0 = arith.constant 0 : i32
    %c0_i32_1 = arith.constant 0 : i32
    return %c0_i32, %c0_i32_0 : i32, i32
  }
  func.func @transform_6(%arg0: i32) -> (i32, i32) {
    %c0_i32 = arith.constant 0 : i32
    %c0_i32_0 = arith.constant 0 : i32
    return %arg0, %c0_i32 : i32, i32
  }
}

</mosaic_0001>

<llo_original>
// kernel: _forward_impl.1
$region0: #{_forward_impl.1}
  #allocation0 [shape = 'u32[]', space=smem, size = 0x4, offset = 0x4, fixed_abs, tag = 'smem constant byte address 0x4 - core index']
  #allocation1 [shape = 'u32[144,128]{1,0:T(1,128)}', space=vmem, size = 0x12000, scoped, tag = 'internal scratch']
  %s0 = inlined_call_operand.vmem [shape: bf16[16,64], index: 0, kind: input, shape index: {}]
  %s1 = inlined_call_operand.vmem [shape: bf16[64,32], index: 1, kind: input, shape index: {}]
  %s2 = inlined_call_operand.vmem [shape: f32[1,32], index: 2, kind: input, shape index: {}]
  %s3 = inlined_call_operand.hbm [shape: bf16[32,32], index: 3, kind: input, shape index: {}]
  %s4 = inlined_call_operand.hbm [shape: bf16[32,128], index: 4, kind: input, shape index: {}]
  %s5 = inlined_call_operand.vmem [shape: bf16[64,128], index: 5, kind: input, shape index: {}]
  %s6 = inlined_call_operand.vmem [shape: f32[16,128], index: 6, kind: output, shape index: {}]
  %s7 = sld [smem:[#allocation0]]
  $region42: #{_forward_impl.1} parent=0
    _
  %s9 = ssub.s32 1, %s7
  %s10 = scalar_select 0, %s9, %s7
  $region1: #{_forward_impl.1} parent=0
    #allocation2 [shape = 'u8[8192]{0}', space=vmem, size = 0x2000, scoped, tag = 'input window, operand 3, single buffered']
    #allocation3 [shape = 's32[1]{0}', space=sflag, size = 0x4, scoped, tag = 'scoped memory for _forward_impl.1']
    #allocation4 [shape = 'u8[8192]{0}', space=vmem, size = 0x2000, scoped, tag = 'input window, operand 4, single buffered']
    #allocation5 [shape = 's32[1]{0}', space=sflag, size = 0x4, scoped, tag = 'scoped memory for _forward_impl.1']
    %11 = vsyncpa [#allocation3], 0
    %12 = vsyncpa [#allocation5], 0
    // Predicated region
    $region2: #{_forward_impl.1} parent=1 // pred_check
      _
    $region3: #{_forward_impl.1} parent=1 // pred_check_branch
      %14 = sbr.rel (0) target = $region5
    $region4: #{_forward_impl.1} parent=1 // pred_region
      _
    $region5: #{_forward_impl.1} parent=1 // pred_fallthru
      _
    // Predicated region
    $region6: #{_forward_impl.1} parent=1 // pred_check
      _
    $region7: #{_forward_impl.1} parent=1 // pred_check_branch
      %16 = sbr.rel (0) target = $region9
    $region8: #{_forward_impl.1} parent=1 // pred_region
      _
    $region9: #{_forward_impl.1} parent=1 // pred_fallthru
      _
    // Predicated region
    $region10: #{_forward_impl.1} parent=1 // pred_check
      _
    $region11: #{_forward_impl.1} parent=1 // pred_check_branch
      %18 = sbr.rel (0) target = $region13
    $region12: #{_forward_impl.1} parent=1 // pred_region
      _
    $region13: #{_forward_impl.1} parent=1 // pred_fallthru
      _
    // Predicated region
    $region14: #{_forward_impl.1} parent=1 // pred_check
      _
    $region15: #{_forward_impl.1} parent=1 // pred_check_branch
      %20 = sbr.rel (0) target = $region17
    $region16: #{_forward_impl.1} parent=1 // pred_region
      %s22 = ssub.s32 256, 256
      %23 = vsyncadd [#allocation3], %s22
      %s24 = sshll.u32 [#allocation2], 4
      %s25 = int_to_ptr.vmem [resolvable:$true] %s24
      %30 = dma.hbm_to_vmem [thread:$0]  %s3, 256, %s25, [#allocation3], 64, 64, 4
    $region17: #{_forward_impl.1} parent=1 // pred_fallthru
      _
    // Predicated region
    $region18: #{_forward_impl.1} parent=1 // pred_check
      _
    $region19: #{_forward_impl.1} parent=1 // pred_check_branch
      %32 = sbr.rel (0) target = $region21
    $region20: #{_forward_impl.1} parent=1 // pred_region
      %s34 = ssub.s32 256, 256
      %35 = vsyncadd [#allocation5], %s34
      %s36 = sshll.u32 [#allocation4], 4
      %s37 = int_to_ptr.vmem [resolvable:$true] %s36
      %42 = dma.hbm_to_vmem [thread:$0]  %s4, 256, %s37, [#allocation5], 64, 64, 4
    $region21: #{_forward_impl.1} parent=1 // pred_fallthru
      _
    // Predicated region
    $region22: #{_forward_impl.1} parent=1 // pred_check
      _
    $region23: #{_forward_impl.1} parent=1 // pred_check_branch
      %44 = sbr.rel (0) target = $region25
    $region24: #{_forward_impl.1} parent=1 // pred_region
      _
    $region25: #{_forward_impl.1} parent=1 // pred_fallthru
      _
    // Predicated region
    $region26: #{_forward_impl.1} parent=1 // pred_check
      _
    $region27: #{_forward_impl.1} parent=1 // pred_check_branch
      %46 = sbr.rel (0) target = $region29
    $region28: #{_forward_impl.1} parent=1 // pred_region
      %47 = dma.done [#allocation3], 256
    $region29: #{_forward_impl.1} parent=1 // pred_fallthru
      _
    // Predicated region
    $region30: #{_forward_impl.1} parent=1 // pred_check
      _
    $region31: #{_forward_impl.1} parent=1 // pred_check_branch
      %49 = sbr.rel (0) target = $region33
    $region32: #{_forward_impl.1} parent=1 // pred_region
      %50 = dma.done [#allocation5], 256
    $region33: #{_forward_impl.1} parent=1 // pred_fallthru
      _
    %v52 = vld [vmem:[%s0] sm:$0xf]
    %v53 = vld [vmem:[%s0 + $0x4] sm:$0xf]
    %v54 = vld [vmem:[%s1] sm:$0xf]
    %v55 = vld [vmem:[%s1 + $0x4] sm:$0xf]
    %v56 = vld [vmem:[%s1 + $0x8] sm:$0xf]
    %v57 = vld [vmem:[%s1 + $0xc] sm:$0xf]
    %v58 = vld [vmem:[%s1 + $0x10] sm:$0xf]
    %v59 = vld [vmem:[%s1 + $0x14] sm:$0xf]
    %v60 = vld [vmem:[%s1 + $0x18] sm:$0xf]
    %v61 = vld [vmem:[%s1 + $0x1c] sm:$0xf]
    %v62 = vld [vmem:[%s2] sm:$0x1]
    %v64 = vlaneseq
    %v65 = vshrl.u32 %v64, 7
    %v66 = vsub.s32 0, %v65
    %v67 = vrot.slane %v62, %v66
    %v71 = vunpack.c.l.b16 %v52
    %v72 = vunpack.c.l.b16 %v53
    %v73 = vpack.c.b16 %v72, %v71
    %v82 = vunpack.c.l.b16 %v54
    %v83 = vunpack.c.l.b16 %v55
    %v84 = vunpack.c.l.b16 %v56
    %v85 = vunpack.c.l.b16 %v57
    %v86 = vunpack.c.l.b16 %v58
    %v87 = vunpack.c.l.b16 %v59
    %v88 = vunpack.c.l.b16 %v60
    %v89 = vunpack.c.l.b16 %v61
    %v90 = vpack.c.b16 %v83, %v82
    %v91 = vpack.c.b16 %v85, %v84
    %v92 = vpack.c.b16 %v87, %v86
    %v93 = vpack.c.b16 %v89, %v88
    %vm98 = vcmask 523264
    %v100 = vsel %vm98, %v73, 0
    %102 = vmatprep.subr.bf16.mxu0 0
    %103 = vmatpush1.bf16.msra.mxu0 %v90
    %104 = vmatprep.subr.bf16.mxu0 0
    %105 = vmatpush1.bf16.msra.mxu0 %v91
    %106 = vmatprep.subr.bf16.mxu0 0
    %107 = vmatpush1.bf16.msra.mxu0 %v92
    %108 = vmatprep.subr.bf16.mxu0 0
    %109 = vmatpush1.bf16.msra.mxu0 %v93
    %110 = vmatprep.subr.bf16.mxu0 0
    %111 = vmatpush1.bf16.msra.mxu0 0
    %112 = vmatprep.subr.bf16.mxu0 0
    %113 = vmatpush1.bf16.msra.mxu0 0
    %114 = vmatprep.subr.bf16.mxu0 0
    %115 = vmatpush1.bf16.msra.mxu0 0
    %116 = vmatprep.subr.bf16.mxu0 0
    %117 = vmatpush1.bf16.msra.mxu0 0
    %118 = vmatprep.subr.bf16.mxu0 0
    %119 = vmatpush1.bf16.msra.mxu0 0
    %120 = vmatprep.subr.bf16.mxu0 0
    %121 = vmatpush1.bf16.msra.mxu0 0
    %122 = vmatprep.subr.bf16.mxu0 0
    %123 = vmatpush1.bf16.msra.mxu0 0
    %124 = vmatprep.subr.bf16.mxu0 0
    %125 = vmatpush1.bf16.msra.mxu0 0
    %126 = vmatprep.subr.bf16.mxu0 0
    %127 = vmatpush1.bf16.msra.mxu0 0
    %128 = vmatprep.subr.bf16.mxu0 0
    %129 = vmatpush1.bf16.msra.mxu0 0
    %130 = vmatprep.subr.bf16.mxu0 0
    %131 = vmatpush1.bf16.msra.mxu0 0
    %132 = vmatprep.subr.bf16.mxu0 0
    %133 = vmatpush1.bf16.msra.mxu0 0
    %134 = vmatprep.mubr.bf16.mxu0 0
    %135 = vmatmul.mubr.bf16.gmra.mrb[0].mxu0 %v100
    %v136 = vpop.f32.mrb[0].mxu0
    %v137 = vadd.f32 %v67, %v136
    %v138 = vpop.f32.mrb[0].mxu0
    %v139 = vpop.f32.mrb[0].mxu0
    %v140 = vadd.f32 %v67, %v139
    %v141 = vpop.f32.mrb[0].mxu0
    %142 = vdwg.mxu0
    %v143 = vmax.f32 %v137, 0.0
    %v144 = vmax.f32 %v140, 0.0
    %v145 = vpack.c.bf16 %v144, %v143
    %v146 = vld [vmem:[#allocation2] sm:$0xf]
    %v147 = vld [vmem:[#allocation2 + $0x4] sm:$0xf]
    %v148 = vld [vmem:[#allocation2 + $0x8] sm:$0xf]
    %v149 = vld [vmem:[#allocation2 + $0xc] sm:$0xf]
    %v154 = vunpack.c.l.b16 %v146
    %v155 = vunpack.c.l.b16 %v147
    %v156 = vunpack.c.l.b16 %v148
    %v157 = vunpack.c.l.b16 %v149
    %v158 = vpack.c.b16 %v155, %v154
    %v159 = vpack.c.b16 %v157, %v156
    %vm162 = vcmask 261120
    %v164 = vsel %vm162, %v145, 0
    %166 = vmatprep.subr.bf16.mxu0 0
    %167 = vmatpush1.bf16.msra.mxu0 %v158
    %168 = vmatprep.subr.bf16.mxu0 0
    %169 = vmatpush1.bf16.msra.mxu0 %v159
    %170 = vmatprep.subr.bf16.mxu0 0
    %171 = vmatpush1.bf16.msra.mxu0 0
    %172 = vmatprep.subr.bf16.mxu0 0
    %173 = vmatpush1.bf16.msra.mxu0 0
    %174 = vmatprep.subr.bf16.mxu0 0
    %175 = vmatpush1.bf16.msra.mxu0 0
    %176 = vmatprep.subr.bf16.mxu0 0
    %177 = vmatpush1.bf16.msra.mxu0 0
    %178 = vmatprep.subr.bf16.mxu0 0
    %179 = vmatpush1.bf16.msra.mxu0 0
    %180 = vmatprep.subr.bf16.mxu0 0
    %181 = vmatpush1.bf16.msra.mxu0 0
    %182 = vmatprep.subr.bf16.mxu0 0
    %183 = vmatpush1.bf16.msra.mxu0 0
    %184 = vmatprep.subr.bf16.mxu0 0
    %185 = vmatpush1.bf16.msra.mxu0 0
    %186 = vmatprep.subr.bf16.mxu0 0
    %187 = vmatpush1.bf16.msra.mxu0 0
    %188 = vmatprep.subr.bf16.mxu0 0
    %189 = vmatpush1.bf16.msra.mxu0 0
    %190 = vmatprep.subr.bf16.mxu0 0
    %191 = vmatpush1.bf16.msra.mxu0 0
    %192 = vmatprep.subr.bf16.mxu0 0
    %193 = vmatpush1.bf16.msra.mxu0 0
    %194 = vmatprep.subr.bf16.mxu0 0
    %195 = vmatpush1.bf16.msra.mxu0 0
    %196 = vmatprep.subr.bf16.mxu0 0
    %197 = vmatpush1.bf16.msra.mxu0 0
    %198 = vmatprep.mubr.bf16.mxu0 0
    %199 = vmatmul.mubr.bf16.gmra.mrb[0].mxu0 %v164
    %v200 = vpop.f32.mrb[0].mxu0
    %v201 = vadd.f32 0.0, %v200
    %v202 = vpop.f32.mrb[0].mxu0
    %v203 = vpop.f32.mrb[0].mxu0
    %v204 = vadd.f32 0.0, %v203
    %v205 = vpop.f32.mrb[0].mxu0
    %206 = vdwg.mxu0
    %v207 = vmax.f32 %v201, 0.0
    %v208 = vmax.f32 %v204, 0.0
    %v209 = vpack.c.bf16 %v208, %v207
    %v210 = vld [vmem:[#allocation4] sm:$0xf]
    %v211 = vld [vmem:[#allocation4 + $0x4] sm:$0xf]
    %v212 = vld [vmem:[#allocation4 + $0x8] sm:$0xf]
    %v213 = vld [vmem:[#allocation4 + $0xc] sm:$0xf]
    %v214 = vld [vmem:[%s5] sm:$0xf]
    %v215 = vld [vmem:[%s5 + $0x4] sm:$0xf]
    %v216 = vld [vmem:[%s5 + $0x8] sm:$0xf]
    %v217 = vld [vmem:[%s5 + $0xc] sm:$0xf]
    %v218 = vld [vmem:[%s5 + $0x10] sm:$0xf]
    %v219 = vld [vmem:[%s5 + $0x14] sm:$0xf]
    %v220 = vld [vmem:[%s5 + $0x18] sm:$0xf]
    %v221 = vld [vmem:[%s5 + $0x1c] sm:$0xf]
    %v230 = vunpack.c.l.b16 %v214
    %v231 = vunpack.c.l.b16 %v215
    %v232 = vunpack.c.l.b16 %v216
    %v233 = vunpack.c.l.b16 %v217
    %v234 = vunpack.c.l.b16 %v218
    %v235 = vunpack.c.l.b16 %v219
    %v236 = vunpack.c.l.b16 %v220
    %v237 = vunpack.c.l.b16 %v221
    %v238 = vpack.c.b16 %v231, %v230
    %v239 = vpack.c.b16 %v233, %v232
    %v240 = vpack.c.b16 %v235, %v234
    %v241 = vpack.c.b16 %v237, %v236
    %246 = vmatprep.subr.bf16.mxu0 0
    %247 = vmatpush1.bf16.msra.mxu0 %v238
    %248 = vmatprep.subr.bf16.mxu0 0
    %249 = vmatpush1.bf16.msra.mxu0 %v239
    %250 = vmatprep.subr.bf16.mxu0 0
    %251 = vmatpush1.bf16.msra.mxu0 %v240
    %252 = vmatprep.subr.bf16.mxu0 0
    %253 = vmatpush1.bf16.msra.mxu0 %v241
    %254 = vmatprep.subr.bf16.mxu0 0
    %255 = vmatpush1.bf16.msra.mxu0 0
    %256 = vmatprep.subr.bf16.mxu0 0
    %257 = vmatpush1.bf16.msra.mxu0 0
    %258 = vmatprep.subr.bf16.mxu0 0
    %259 = vmatpush1.bf16.msra.mxu0 0
    %260 = vmatprep.subr.bf16.mxu0 0
    %261 = vmatpush1.bf16.msra.mxu0 0
    %262 = vmatprep.subr.bf16.mxu0 0
    %263 = vmatpush1.bf16.msra.mxu0 0
    %264 = vmatprep.subr.bf16.mxu0 0
    %265 = vmatpush1.bf16.msra.mxu0 0
    %266 = vmatprep.subr.bf16.mxu0 0
    %267 = vmatpush1.bf16.msra.mxu0 0
    %268 = vmatprep.subr.bf16.mxu0 0
    %269 = vmatpush1.bf16.msra.mxu0 0
    %270 = vmatprep.subr.bf16.mxu0 0
    %271 = vmatpush1.bf16.msra.mxu0 0
    %272 = vmatprep.subr.bf16.mxu0 0
    %273 = vmatpush1.bf16.msra.mxu0 0
    %274 = vmatprep.subr.bf16.mxu0 0
    %275 = vmatpush1.bf16.msra.mxu0 0
    %276 = vmatprep.subr.bf16.mxu0 0
    %277 = vmatpush1.bf16.msra.mxu0 0
    %278 = vmatprep.mubr.bf16.mxu0 0
    %279 = vmatmul.mubr.bf16.gmra.mrb[0].mxu0 %v100
    %v280 = vpop.f32.mrb[0].mxu0
    %v281 = vadd.f32 0.0, %v280
    %v282 = vpop.f32.mrb[0].mxu0
    %v283 = vpop.f32.mrb[0].mxu0
    %v284 = vadd.f32 0.0, %v283
    %v285 = vpop.f32.mrb[0].mxu0
    %286 = vdwg.mxu0
    %v291 = vunpack.c.l.b16 %v210
    %v292 = vunpack.c.l.b16 %v211
    %v293 = vunpack.c.l.b16 %v212
    %v294 = vunpack.c.l.b16 %v213
    %v295 = vpack.c.b16 %v292, %v291
    %v296 = vpack.c.b16 %v294, %v293
    %v300 = vsel %vm162, %v209, 0
    %302 = vmatprep.subr.bf16.mxu0 0
    %303 = vmatpush1.bf16.msra.mxu0 %v295
    %304 = vmatprep.subr.bf16.mxu0 0
    %305 = vmatpush1.bf16.msra.mxu0 %v296
    %306 = vmatprep.subr.bf16.mxu0 0
    %307 = vmatpush1.bf16.msra.mxu0 0
    %308 = vmatprep.subr.bf16.mxu0 0
    %309 = vmatpush1.bf16.msra.mxu0 0
    %310 = vmatprep.subr.bf16.mxu0 0
    %311 = vmatpush1.bf16.msra.mxu0 0
    %312 = vmatprep.subr.bf16.mxu0 0
    %313 = vmatpush1.bf16.msra.mxu0 0
    %314 = vmatprep.subr.bf16.mxu0 0
    %315 = vmatpush1.bf16.msra.mxu0 0
    %316 = vmatprep.subr.bf16.mxu0 0
    %317 = vmatpush1.bf16.msra.mxu0 0
    %318 = vmatprep.subr.bf16.mxu0 0
    %319 = vmatpush1.bf16.msra.mxu0 0
    %320 = vmatprep.subr.bf16.mxu0 0
    %321 = vmatpush1.bf16.msra.mxu0 0
    %322 = vmatprep.subr.bf16.mxu0 0
    %323 = vmatpush1.bf16.msra.mxu0 0
    %324 = vmatprep.subr.bf16.mxu0 0
    %325 = vmatpush1.bf16.msra.mxu0 0
    %326 = vmatprep.subr.bf16.mxu0 0
    %327 = vmatpush1.bf16.msra.mxu0 0
    %328 = vmatprep.subr.bf16.mxu0 0
    %329 = vmatpush1.bf16.msra.mxu0 0
    %330 = vmatprep.subr.bf16.mxu0 0
    %331 = vmatpush1.bf16.msra.mxu0 0
    %332 = vmatprep.subr.bf16.mxu0 0
    %333 = vmatpush1.bf16.msra.mxu0 0
    %334 = vmatprep.mubr.bf16.mxu0 0
    %335 = vmatmul.mubr.bf16.gmra.mrb[0].mxu0 %v300
    %v336 = vpop.f32.mrb[0].mxu0
    %v337 = vadd.f32 %v281, %v336
    %v338 = vpop.f32.mrb[0].mxu0
    %v339 = vpop.f32.mrb[0].mxu0
    %v340 = vadd.f32 %v284, %v339
    %v341 = vpop.f32.mrb[0].mxu0
    %342 = vdwg.mxu0
    %343 = vst [vmem:[%s6] sm:$0xff] %v337
    %344 = vst [vmem:[%s6 + $0x8] sm:$0xff] %v340
    // Predicated region
    $region34: #{_forward_impl.1} parent=1 // pred_check
      _
    $region35: #{_forward_impl.1} parent=1 // pred_check_branch
      %346 = sbr.rel (0) target = $region37
    $region36: #{_forward_impl.1} parent=1 // pred_region
      _
    $region37: #{_forward_impl.1} parent=1 // pred_fallthru
      _
    // Predicated region
    $region38: #{_forward_impl.1} parent=1 // pred_check
      _
    $region39: #{_forward_impl.1} parent=1 // pred_check_branch
      %348 = sbr.rel (0) target = $region41
    $region40: #{_forward_impl.1} parent=1 // pred_region
      _
    $region41: #{_forward_impl.1} parent=1 // pred_fallthru
      _
    %349 = vsyncpa [#allocation3], 1
    %350 = vsyncpa [#allocation5], 1

</llo_original>
